<compile_context>
chip_gen: v7x
topology: tpu7x:2x2x1
jax: 0.10.0
libtpu: 0.0.40
codegen_flags: <defaults>
</compile_context>

<pallas_src>
import jax
import jax.numpy as jnp
from jax.experimental import pallas as pl
from jax.experimental.pallas import tpu as pltpu


def mlp_kernel(x_ref, w1_ref, b1_ref, w2_ref, b2_ref, o_ref):
    # x:  [TILE_B, D] f32 (per-grid-step batch tile)
    # w1: [D, H1] bf16   b1: [1, H1] f32   (pre-transposed/cast in the wrapper)
    # w2: [H1, H2] bf16  b2: [1, H2] f32
    #
    # dropout_1: identity (eval mode)
    x = x_ref[...].astype(jnp.bfloat16)                        # bf16 MXU fast path
    h = jnp.dot(x, w1_ref[...], preferred_element_type=jnp.float32)   # [TILE_B, H1]
    h = jnp.maximum(h + b1_ref[...], 0.0)                      # bias + ReLU in f32
    # dropout_2: identity (eval mode)
    y = jnp.dot(h.astype(jnp.bfloat16), w2_ref[...],
                preferred_element_type=jnp.float32)            # [TILE_B, H2]
    o_ref[...] = (y + b2_ref[...]).astype(o_ref.dtype)


def _choose_tile_b(B, tile_b, split_threshold):
    """Pick a batch tile: huge tiles to amortize per-step overhead, but for large
    batches force an even number of grid steps (>= 2) so the 'parallel' batch
    axis shards across both TensorCores on v7x."""
    if B < split_threshold:
        return B                       # too small to pay for a second grid step
    steps = max(2, pl.cdiv(B, tile_b))
    if steps % 2:
        steps += 1                     # even step count -> both TCs busy on v7x
    tb = pl.cdiv(B, steps)
    return ((tb + 7) // 8) * 8         # sublane multiple


def linear_classifier_forward(x, w1, b1, w2, b2, *, tile_b=8192, split_threshold=1024):
    """x: [B, D] f32.  w1: [out1, D], b1: [out1], w2: [out2, out1], b2: [out2]
    (PyTorch Linear layout).  Returns [B, out2] f32."""
    B, D = x.shape
    out1, d_in = w1.shape
    assert d_in == D, (d_in, D)
    out2 = w2.shape[0]

    # One-time wrapper-side prep of the tiny, grid-resident weights:
    # transpose to [in, out] (canonical contraction, no per-step XLU transpose)
    # and cast to bf16 once (no per-step VPU cast, half the residency bytes).
    w1_t = w1.T.astype(jnp.bfloat16)        # [D, out1]
    w2_t = w2.T.astype(jnp.bfloat16)        # [out1, out2]
    b1_2d = b1.reshape(1, out1)             # f32 bias, broadcasts over the tile
    b2_2d = b2.reshape(1, out2)

    tb = _choose_tile_b(B, tile_b, split_threshold)
    grid = (pl.cdiv(B, tb),)

    # Right-size the scoped VMEM budget: double-buffered streamed tiles,
    # resident weights/biases, and the in-kernel bf16/f32 intermediates.
    f32, bf16 = 4, 2
    stream_bytes = 2 * (tb * D * f32 + tb * out2 * f32)            # x/out, 2 bufs each
    resident_bytes = 2 * ((D * out1 + out1 * out2) * bf16 + (out1 + out2) * f32)
    temp_bytes = tb * D * bf16 + tb * out1 * (f32 + bf16) + tb * out2 * f32
    vmem_bytes = int(1.5 * (stream_bytes + resident_bytes + temp_bytes))
    vmem_bytes = max(vmem_bytes, 16 * 1024 * 1024)
    vmem_bytes = min(vmem_bytes, 48 * 1024 * 1024)   # headroom under v7x's 64 MiB

    cost = pl.CostEstimate(
        flops=2 * B * (D * out1 + out1 * out2),
        transcendentals=0,
        bytes_accessed=B * (D + out2) * f32
        + (D * out1 + out1 * out2) * bf16 + (out1 + out2) * f32,
    )

    return pl.pallas_call(
        mlp_kernel,
        out_shape=jax.ShapeDtypeStruct((B, out2), x.dtype),
        grid=grid,
        in_specs=[
            pl.BlockSpec((tb, D), lambda i: (i, 0)),        # batch-tiled activations
            pl.BlockSpec((D, out1), lambda i: (0, 0)),      # resident bf16 weights
            pl.BlockSpec((1, out1), lambda i: (0, 0)),
            pl.BlockSpec((out1, out2), lambda i: (0, 0)),
            pl.BlockSpec((1, out2), lambda i: (0, 0)),
        ],
        out_specs=pl.BlockSpec((tb, out2), lambda i: (i, 0)),
        compiler_params=pltpu.CompilerParams(
            dimension_semantics=("parallel",),              # batch sharded across TCs
            vmem_limit_bytes=vmem_bytes,
        ),
        cost_estimate=cost,
    )(x, w1_t, b1_2d, w2_t, b2_2d)


def reference_forward(x, w1, b1, w2, b2):
    h = jnp.maximum(x @ w1.T + b1, 0.0)
    return h @ w2.T + b2


if __name__ == "__main__":
    # Module hyperparameters (small shapes).
    num_inputs = 32      # -> out_features of first LazyLinear (LazyLinear quirk)
    num_hidden = 16      # -> out_features of second LazyLinear
    num_outputs = 8      # unused by the module (LazyLinear quirk)
    dropout_prob_1 = 0.1 # identity in eval mode
    dropout_prob_2 = 0.2 # identity in eval mode

    in_features = 64     # inferred lazily from X in PyTorch

    key = jax.random.PRNGKey(0)
    kx, kw1, kb1, kw2, kb2, kx2 = jax.random.split(key, 6)

    # Deterministic init mimicking torch Linear: U(-1/sqrt(fan_in), 1/sqrt(fan_in))
    bound1 = 1.0 / (in_features ** 0.5)
    w1 = jax.random.uniform(kw1, (num_inputs, in_features), jnp.float32, -bound1, bound1)
    b1 = jax.random.uniform(kb1, (num_inputs,), jnp.float32, -bound1, bound1)

    bound2 = 1.0 / (num_inputs ** 0.5)
    w2 = jax.random.uniform(kw2, (num_hidden, num_inputs), jnp.float32, -bound2, bound2)
    b2 = jax.random.uniform(kb2, (num_hidden,), jnp.float32, -bound2, bound2)

    # Small-shape check (single grid step).
    batch = 8
    x = jax.random.normal(kx, (batch, in_features), dtype=jnp.float32)
    out = jax.block_until_ready(linear_classifier_forward(x, w1, b1, w2, b2))
    ref = reference_forward(x, w1, b1, w2, b2)
    assert out.shape == (batch, num_hidden), out.shape
    # bf16 matmul operands with f32 accumulation -> relaxed tolerance vs f32 reference.
    assert jnp.allclose(out, ref, atol=2e-2, rtol=2e-2), "mismatch vs reference (small)"

    # Multi-step check: exercises the even (>=2) 'parallel' batch grid (megacore path).
    batch2 = 2048
    x2 = jax.random.normal(kx2, (batch2, in_features), dtype=jnp.float32)
    y2 = jax.block_until_ready(
        linear_classifier_forward(x2, w1, b1, w2, b2, tile_b=1024, split_threshold=1024))
    ref2 = reference_forward(x2, w1, b1, w2, b2)
    assert y2.shape == (batch2, num_hidden), y2.shape
    assert jnp.allclose(y2, ref2, atol=5e-2, rtol=5e-2), "mismatch vs reference (tiled)"

    print("KERNEL_OK")
</pallas_src>

<mosaic_0001>
module attributes {stable_mosaic.version = 11 : i64} {
  func.func @mlp_kernel(%arg0: i32, %arg1: memref<8x64xf32, #tpu.memory_space<vmem>>, %arg2: memref<64x32xbf16, #tpu.memory_space<vmem>>, %arg3: memref<1x32xf32, #tpu.memory_space<vmem>>, %arg4: memref<32x16xbf16, #tpu.memory_space<vmem>>, %arg5: memref<1x16xf32, #tpu.memory_space<vmem>>, %arg6: memref<8x16xf32, #tpu.memory_space<vmem>>) attributes {dimension_semantics = [#tpu.dimension_semantics<parallel>], iteration_bounds = array<i64: 1>, scalar_prefetch = 0 : i64, scratch_operands = 0 : i64, tpu.core_type = #tpu.core_type<tc>, window_params = [{transform_indices = @transform_0, window_bounds = array<i64: 8, 64>}, {pipeline_mode = #tpu.pipeline_mode<synchronous>, transform_indices = @transform_1, window_bounds = array<i64: 64, 32>}, {pipeline_mode = #tpu.pipeline_mode<synchronous>, transform_indices = @transform_2, window_bounds = array<i64: 1, 32>}, {pipeline_mode = #tpu.pipeline_mode<synchronous>, transform_indices = @transform_3, window_bounds = array<i64: 32, 16>}, {pipeline_mode = #tpu.pipeline_mode<synchronous>, transform_indices = @transform_4, window_bounds = array<i64: 1, 16>}, {transform_indices = @transform_5, window_bounds = array<i64: 8, 16>}]} {
    %c0 = arith.constant 0 : index
    %c0_0 = arith.constant 0 : index
    %0 = vector.load %arg1[%c0, %c0_0] : memref<8x64xf32, #tpu.memory_space<vmem>>, vector<8x64xf32>
    %1 = arith.truncf %0 : vector<8x64xf32> to vector<8x64xbf16>
    %c0_1 = arith.constant 0 : index
    %c0_2 = arith.constant 0 : index
    %2 = vector.load %arg2[%c0_1, %c0_2] : memref<64x32xbf16, #tpu.memory_space<vmem>>, vector<64x32xbf16>
    %cst = arith.constant dense<0.000000e+00> : vector<8x32xf32>
    %3 = tpu.matmul %1, %2, %cst {dimension_numbers = #tpu.dot_dimension_numbers<[1], [0], [0], [1], [0, 0, 1, 1], [], []>} : vector<8x64xbf16>, vector<64x32xbf16>, vector<8x32xf32> -> vector<8x32xf32>
    %c0_3 = arith.constant 0 : index
    %c0_4 = arith.constant 0 : index
    %4 = vector.load %arg3[%c0_3, %c0_4] : memref<1x32xf32, #tpu.memory_space<vmem>>, vector<1x32xf32>
    %5 = vector.broadcast %4 : vector<1x32xf32> to vector<8x32xf32>
    %6 = arith.addf %3, %5 : vector<8x32xf32>
    %cst_5 = arith.constant 0.000000e+00 : f32
    %7 = vector.broadcast %cst_5 : f32 to vector<8x32xf32>
    %8 = arith.maximumf %6, %7 : vector<8x32xf32>
    %9 = arith.truncf %8 : vector<8x32xf32> to vector<8x32xbf16>
    %c0_6 = arith.constant 0 : index
    %c0_7 = arith.constant 0 : index
    %10 = vector.load %arg4[%c0_6, %c0_7] : memref<32x16xbf16, #tpu.memory_space<vmem>>, vector<32x16xbf16>
    %cst_8 = arith.constant dense<0.000000e+00> : vector<8x16xf32>
    %11 = tpu.matmul %9, %10, %cst_8 {dimension_numbers = #tpu.dot_dimension_numbers<[1], [0], [0], [1], [0, 0, 1, 1], [], []>} : vector<8x32xbf16>, vector<32x16xbf16>, vector<8x16xf32> -> vector<8x16xf32>
    %c0_9 = arith.constant 0 : index
    %c0_10 = arith.constant 0 : index
    %12 = vector.load %arg5[%c0_9, %c0_10] : memref<1x16xf32, #tpu.memory_space<vmem>>, vector<1x16xf32>
    %13 = vector.broadcast %12 : vector<1x16xf32> to vector<8x16xf32>
    %14 = arith.addf %11, %13 : vector<8x16xf32>
    %c0_11 = arith.constant 0 : index
    %c0_12 = arith.constant 0 : index
    %15 = vector.load %arg6[%c0_11, %c0_12] : memref<8x16xf32, #tpu.memory_space<vmem>>, vector<8x16xf32>
    tpu.vector_store %arg6[%c0_11, %c0_12], %14 {strides = array<i32>} : memref<8x16xf32, #tpu.memory_space<vmem>>, vector<8x16xf32>,
    return
  }
  func.func @transform_0(%arg0: i32) -> (i32, i32) {
    %c0_i32 = arith.constant 0 : i32
    %c0_i32_0 = arith.constant 0 : i32
    return %arg0, %c0_i32 : i32, i32
  }
  func.func @transform_1(%arg0: i32) -> (i32, i32) {
    %c0_i32 = arith.constant 0 : i32
    %c0_i32_0 = arith.constant 0 : i32
    %c0_i32_1 = arith.constant 0 : i32
    return %c0_i32, %c0_i32_0 : i32, i32
  }
  func.func @transform_2(%arg0: i32) -> (i32, i32) {
    %c0_i32 = arith.constant 0 : i32
    %c0_i32_0 = arith.constant 0 : i32
    %c0_i32_1 = arith.constant 0 : i32
    return %c0_i32, %c0_i32_0 : i32, i32
  }
  func.func @transform_3(%arg0: i32) -> (i32, i32) {
    %c0_i32 = arith.constant 0 : i32
    %c0_i32_0 = arith.constant 0 : i32
    %c0_i32_1 = arith.constant 0 : i32
    return %c0_i32, %c0_i32_0 : i32, i32
  }
  func.func @transform_4(%arg0: i32) -> (i32, i32) {
    %c0_i32 = arith.constant 0 : i32
    %c0_i32_0 = arith.constant 0 : i32
    %c0_i32_1 = arith.constant 0 : i32
    return %c0_i32, %c0_i32_0 : i32, i32
  }
  func.func @transform_5(%arg0: i32) -> (i32, i32) {
    %c0_i32 = arith.constant 0 : i32
    %c0_i32_0 = arith.constant 0 : i32
    return %arg0, %c0_i32 : i32, i32
  }
}

</mosaic_0001>

<llo_original>
// kernel: tpu_custom_call.1
$region0: #{tpu_custom_call.1}
  #allocation0 [shape = 'u32[]', space=smem, size = 0x4, offset = 0x4, fixed_abs, tag = 'smem constant byte address 0x4 - core index']
  #allocation1 [shape = 'u32[144,128]{1,0:T(1,128)}', space=vmem, size = 0x12000, scoped, tag = 'internal scratch']
  %s0 = inlined_call_operand.vmem [shape: f32[8,64], index: 0, kind: input, shape index: {}]
  %s1 = inlined_call_operand.vmem [shape: bf16[64,32], index: 1, kind: input, shape index: {}]
  %s2 = inlined_call_operand.vmem [shape: f32[1,32], index: 2, kind: input, shape index: {}]
  %s3 = inlined_call_operand.vmem [shape: bf16[32,16], index: 3, kind: input, shape index: {}]
  %s4 = inlined_call_operand.vmem [shape: f32[1,16], index: 4, kind: input, shape index: {}]
  %s5 = inlined_call_operand.hbm [shape: f32[8,16], index: 5, kind: output, shape index: {}]
  %s6 = sld [smem:[#allocation0]]
  $region30: #{tpu_custom_call.1} parent=0
    _
  %s8 = ssub.s32 1, %s6
  %s9 = scalar_select 0, %s8, %s6
  $region1: #{tpu_custom_call.1} parent=0
    #allocation2 [shape = 'u8[4096]{0}', space=vmem, size = 0x1000, scoped, tag = 'output window, operand 0, single buffered']
    #allocation3 [shape = 's32[1]{0}', space=sflag, size = 0x4, scoped, tag = 'scoped memory for tpu_custom_call.1']
    %10 = vsyncpa [#allocation3], 0
    // Predicated region
    $region2: #{tpu_custom_call.1} parent=1 // pred_check
      _
    $region3: #{tpu_custom_call.1} parent=1 // pred_check_branch
      %12 = sbr.rel (0) target = $region5
    $region4: #{tpu_custom_call.1} parent=1 // pred_region
      _
    $region5: #{tpu_custom_call.1} parent=1 // pred_fallthru
      _
    // Predicated region
    $region6: #{tpu_custom_call.1} parent=1 // pred_check
      _
    $region7: #{tpu_custom_call.1} parent=1 // pred_check_branch
      %14 = sbr.rel (0) target = $region9
    $region8: #{tpu_custom_call.1} parent=1 // pred_region
      _
    $region9: #{tpu_custom_call.1} parent=1 // pred_fallthru
      _
    // Predicated region
    $region10: #{tpu_custom_call.1} parent=1 // pred_check
      _
    $region11: #{tpu_custom_call.1} parent=1 // pred_check_branch
      %16 = sbr.rel (0) target = $region13
    $region12: #{tpu_custom_call.1} parent=1 // pred_region
      _
    $region13: #{tpu_custom_call.1} parent=1 // pred_fallthru
      _
    // Predicated region
    $region14: #{tpu_custom_call.1} parent=1 // pred_check
      _
    $region15: #{tpu_custom_call.1} parent=1 // pred_check_branch
      %18 = sbr.rel (0) target = $region17
    $region16: #{tpu_custom_call.1} parent=1 // pred_region
      _
    $region17: #{tpu_custom_call.1} parent=1 // pred_fallthru
      _
    // Predicated region
    $region18: #{tpu_custom_call.1} parent=1 // pred_check
      _
    $region19: #{tpu_custom_call.1} parent=1 // pred_check_branch
      %20 = sbr.rel (0) target = $region21
    $region20: #{tpu_custom_call.1} parent=1 // pred_region
      _
    $region21: #{tpu_custom_call.1} parent=1 // pred_fallthru
      _
    %v22 = vld [vmem:[%s0] sm:$0xff]
    %v23 = vpack.c.bf16 %v22, %v22
    %v24 = vld [vmem:[%s1] sm:$0xf]
    %v25 = vld [vmem:[%s1 + $0x4] sm:$0xf]
    %v26 = vld [vmem:[%s1 + $0x8] sm:$0xf]
    %v27 = vld [vmem:[%s1 + $0xc] sm:$0xf]
    %v28 = vld [vmem:[%s1 + $0x10] sm:$0xf]
    %v29 = vld [vmem:[%s1 + $0x14] sm:$0xf]
    %v30 = vld [vmem:[%s1 + $0x18] sm:$0xf]
    %v31 = vld [vmem:[%s1 + $0x1c] sm:$0xf]
    %v32 = vld [vmem:[%s2] sm:$0x1]
    %v34 = vlaneseq
    %v35 = vshrl.u32 %v34, 7
    %v36 = vsub.s32 0, %v35
    %v37 = vrot.slane %v32, %v36
    %v47 = vunpack.c.l.b16 %v24
    %v48 = vunpack.c.l.b16 %v25
    %v49 = vunpack.c.l.b16 %v26
    %v50 = vunpack.c.l.b16 %v27
    %v51 = vunpack.c.l.b16 %v28
    %v52 = vunpack.c.l.b16 %v29
    %v53 = vunpack.c.l.b16 %v30
    %v54 = vunpack.c.l.b16 %v31
    %v55 = vpack.c.b16 %v48, %v47
    %v56 = vpack.c.b16 %v50, %v49
    %v57 = vpack.c.b16 %v52, %v51
    %v58 = vpack.c.b16 %v54, %v53
    %vm63 = vcmask 523264
    %v65 = vsel %vm63, %v23, 0
    %67 = vmatprep.subr.bf16.mxu0 0
    %68 = vmatpush1.bf16.msra.mxu0 %v55
    %69 = vmatprep.subr.bf16.mxu0 0
    %70 = vmatpush1.bf16.msra.mxu0 %v56
    %71 = vmatprep.subr.bf16.mxu0 0
    %72 = vmatpush1.bf16.msra.mxu0 %v57
    %73 = vmatprep.subr.bf16.mxu0 0
    %74 = vmatpush1.bf16.msra.mxu0 %v58
    %75 = vmatprep.subr.bf16.mxu0 0
    %76 = vmatpush1.bf16.msra.mxu0 0
    %77 = vmatprep.subr.bf16.mxu0 0
    %78 = vmatpush1.bf16.msra.mxu0 0
    %79 = vmatprep.subr.bf16.mxu0 0
    %80 = vmatpush1.bf16.msra.mxu0 0
    %81 = vmatprep.subr.bf16.mxu0 0
    %82 = vmatpush1.bf16.msra.mxu0 0
    %83 = vmatprep.subr.bf16.mxu0 0
    %84 = vmatpush1.bf16.msra.mxu0 0
    %85 = vmatprep.subr.bf16.mxu0 0
    %86 = vmatpush1.bf16.msra.mxu0 0
    %87 = vmatprep.subr.bf16.mxu0 0
    %88 = vmatpush1.bf16.msra.mxu0 0
    %89 = vmatprep.subr.bf16.mxu0 0
    %90 = vmatpush1.bf16.msra.mxu0 0
    %91 = vmatprep.subr.bf16.mxu0 0
    %92 = vmatpush1.bf16.msra.mxu0 0
    %93 = vmatprep.subr.bf16.mxu0 0
    %94 = vmatpush1.bf16.msra.mxu0 0
    %95 = vmatprep.subr.bf16.mxu0 0
    %96 = vmatpush1.bf16.msra.mxu0 0
    %97 = vmatprep.subr.bf16.mxu0 0
    %98 = vmatpush1.bf16.msra.mxu0 0
    %99 = vmatprep.mubr.bf16.mxu0 0
    %100 = vmatmul.mubr.bf16.gmra.mrb[0].mxu0 %v65
    %v101 = vpop.f32.mrb[0].mxu0
    %v102 = vadd.f32 %v37, %v101
    %v103 = vpop.f32.mrb[0].mxu0
    %v104 = vpop.f32.mrb[0].mxu0
    %v105 = vpop.f32.mrb[0].mxu0
    %106 = vdwg.mxu0
    %v107 = vmax.f32 %v102, 0.0
    %v108 = vpack.c.bf16 %v107, %v107
    %v109 = vld [vmem:[%s3] sm:$0xf]
    %v110 = vld [vmem:[%s3 + $0x4] sm:$0xf]
    %v111 = vld [vmem:[%s3 + $0x8] sm:$0xf]
    %v112 = vld [vmem:[%s3 + $0xc] sm:$0xf]
    %v113 = vld [vmem:[%s4] sm:$0x1]
    %v115 = vlaneseq
    %v116 = vshrl.u32 %v115, 7
    %v117 = vsub.s32 0, %v116
    %v118 = vrot.slane %v113, %v117
    %v124 = vunpack.c.l.b16 %v109
    %v125 = vunpack.c.l.b16 %v110
    %v126 = vunpack.c.l.b16 %v111
    %v127 = vunpack.c.l.b16 %v112
    %v128 = vpack.c.b16 %v125, %v124
    %v129 = vpack.c.b16 %v127, %v126
    %vm132 = vcmask 261120
    %v134 = vsel %vm132, %v108, 0
    %136 = vmatprep.subr.bf16.mxu0 0
    %137 = vmatpush1.bf16.msra.mxu0 %v128
    %138 = vmatprep.subr.bf16.mxu0 0
    %139 = vmatpush1.bf16.msra.mxu0 %v129
    %140 = vmatprep.subr.bf16.mxu0 0
    %141 = vmatpush1.bf16.msra.mxu0 0
    %142 = vmatprep.subr.bf16.mxu0 0
    %143 = vmatpush1.bf16.msra.mxu0 0
    %144 = vmatprep.subr.bf16.mxu0 0
    %145 = vmatpush1.bf16.msra.mxu0 0
    %146 = vmatprep.subr.bf16.mxu0 0
    %147 = vmatpush1.bf16.msra.mxu0 0
    %148 = vmatprep.subr.bf16.mxu0 0
    %149 = vmatpush1.bf16.msra.mxu0 0
    %150 = vmatprep.subr.bf16.mxu0 0
    %151 = vmatpush1.bf16.msra.mxu0 0
    %152 = vmatprep.subr.bf16.mxu0 0
    %153 = vmatpush1.bf16.msra.mxu0 0
    %154 = vmatprep.subr.bf16.mxu0 0
    %155 = vmatpush1.bf16.msra.mxu0 0
    %156 = vmatprep.subr.bf16.mxu0 0
    %157 = vmatpush1.bf16.msra.mxu0 0
    %158 = vmatprep.subr.bf16.mxu0 0
    %159 = vmatpush1.bf16.msra.mxu0 0
    %160 = vmatprep.subr.bf16.mxu0 0
    %161 = vmatpush1.bf16.msra.mxu0 0
    %162 = vmatprep.subr.bf16.mxu0 0
    %163 = vmatpush1.bf16.msra.mxu0 0
    %164 = vmatprep.subr.bf16.mxu0 0
    %165 = vmatpush1.bf16.msra.mxu0 0
    %166 = vmatprep.subr.bf16.mxu0 0
    %167 = vmatpush1.bf16.msra.mxu0 0
    %168 = vmatprep.mubr.bf16.mxu0 0
    %169 = vmatmul.mubr.bf16.gmra.mrb[0].mxu0 %v134
    %v170 = vpop.f32.mrb[0].mxu0
    %v171 = vadd.f32 %v118, %v170
    %v172 = vpop.f32.mrb[0].mxu0
    %v173 = vpop.f32.mrb[0].mxu0
    %v174 = vpop.f32.mrb[0].mxu0
    %175 = vdwg.mxu0
    %vm176 = vcmask 130048
    %177 = vst.msk [vmem:[#allocation2] sm:$0xff] %vm176, %v171
    // Predicated region
    $region22: #{tpu_custom_call.1} parent=1 // pred_check
      _
    $region23: #{tpu_custom_call.1} parent=1 // pred_check_branch
      %179 = sbr.rel (0) target = $region25
    $region24: #{tpu_custom_call.1} parent=1 // pred_region
      %s181 = ssub.s32 128, 128
      %182 = vsyncadd [#allocation3], %s181
      %s184 = sshll.u32 [#allocation2], 4
      %s185 = int_to_ptr.vmem [resolvable:$true] %s184
      %187 = dma.vmem_to_hbm [thread:$0]  %s185, 128, %s5, [#allocation3]
    $region25: #{tpu_custom_call.1} parent=1 // pred_fallthru
      _
    // Predicated region
    $region26: #{tpu_custom_call.1} parent=1 // pred_check
      _
    $region27: #{tpu_custom_call.1} parent=1 // pred_check_branch
      %189 = sbr.rel (0) target = $region29
    $region28: #{tpu_custom_call.1} parent=1 // pred_region
      %190 = dma.done [#allocation3], 128
    $region29: #{tpu_custom_call.1} parent=1 // pred_fallthru
      _
    %191 = vsyncpa [#allocation3], 1

</llo_original>
